<compile_context>
chip_gen: v7x
topology: tpu7x:2x2x1
jax: 0.10.0
libtpu: 0.0.40
codegen_flags: <defaults>
</compile_context>

<pallas_src>
import math
import functools

import jax
import jax.numpy as jnp
from jax.experimental import pallas as pl
from jax.experimental.pallas import tpu as pltpu


def _attention_kernel(x_ref, wqkv_ref, bqkv_ref, o_ref, *, bb, seq, dim, tq,
                      flat_out):
    BB, T, D, TQ = bb, seq, dim, tq

    # ---- fused Q/K/V projection --------------------------------------------
    # One (BB*T, D) x (D, 3D) MXU matmul; bf16 inputs, f32 accumulation.
    x2d = x_ref[...].reshape(BB * T, D).astype(jnp.bfloat16)
    qkv = jnp.dot(x2d, wqkv_ref[...], preferred_element_type=jnp.float32)
    qkv = (qkv + bqkv_ref[...]).reshape(BB, T, 3 * D)

    # 1/sqrt(D) was pre-folded into the Q weights/bias by the wrapper.
    # TODO(synk): for D % 128 != 0 these lane-dim slices cost an XLU shuffle;
    # padding D to 128 in the wrapper would make them free at the cost of
    # extra HBM traffic.
    q = qkv[:, :, 0 * D:1 * D].astype(jnp.bfloat16)
    k = qkv[:, :, 1 * D:2 * D].astype(jnp.bfloat16)
    v = qkv[:, :, 2 * D:3 * D].astype(jnp.bfloat16)

    # ---- attention, tiled over query rows ------------------------------------
    # Softmax is over the full key axis per query tile, so no online-softmax
    # rescaling carry is needed; peak live score tile is (BB, TQ, T).
    for qi in range(T // TQ):
        q_t = q[:, qi * TQ:(qi + 1) * TQ, :]
        scores = jnp.einsum('bqd,bkd->bqk', q_t, k,
                            preferred_element_type=jnp.float32)
        m = jnp.max(scores, axis=-1, keepdims=True)
        e = jnp.exp(scores - m)
        denom = jnp.sum(e, axis=-1, keepdims=True)
        # Deferred normalization: PV on unnormalized e, rescale the small
        # (BB, TQ, D) result; reciprocal rides the (otherwise idle) EUP slot.
        out_t = jnp.einsum('bqk,bkd->bqd', e.astype(jnp.bfloat16), v,
                           preferred_element_type=jnp.float32)
        out_t = out_t * pl.reciprocal(denom, approx=True)
        if flat_out:
            # Lane-dense store: output block is (BB, T*D), so stores are full
            # 128-lane writes even when D < 128.
            o_ref[:, qi * TQ * D:(qi + 1) * TQ * D] = (
                out_t.reshape(BB, TQ * D).astype(o_ref.dtype))
        else:
            o_ref[:, qi * TQ:(qi + 1) * TQ, :] = out_t.astype(o_ref.dtype)


def _pick_batch_block(B, T, max_rows=512):
    """Largest divisor of B with BB*T <= max_rows, while keeping the grid at
    >= 2 steps when B >= 2 (so both v7x TensorCores get work)."""
    limit = B if B < 2 else max(1, B // 2)
    bb = 1
    for cand in range(1, B + 1):
        if B % cand == 0 and cand <= limit and cand * T <= max_rows:
            bb = cand
    return bb


def _pick_q_tile(T, max_tq=256, max_tiles=64):
    """Largest divisor of T that is <= max_tq (bounded static unroll)."""
    tq = 1
    for cand in range(1, T + 1):
        if T % cand == 0 and cand <= max_tq:
            tq = cand
    if T // tq > max_tiles:
        # TODO(synk): replace the static unroll with a fori_loop / KV-tiled
        # online-softmax for very large or awkward (prime) T.
        tq = T
    return tq


def _vmem_limit_bytes(BB, T, D, TQ, itemsize):
    rows = BB * T
    est = 0
    est += 2 * rows * D * itemsize        # x block, double-buffered
    est += 2 * rows * D * itemsize        # out block, double-buffered
    est += D * 3 * D * 2                  # wqkv (bf16), single-buffered
    est += 3 * D * 4                      # bqkv (f32)
    est += rows * 3 * D * 4               # qkv f32
    est += 3 * rows * D * 2               # q / k / v bf16
    est += BB * TQ * T * (4 + 4 + 2)      # scores f32 + e f32 + e bf16
    est += BB * TQ * D * 4                # out tile f32
    est = 2 * est + (4 << 20)             # relayout / spill headroom
    return int(min(max(est, 32 << 20), 64 << 20))


def temporal_attention(x, wq, bq, wk, bk, wv, bv):
    """x: (B, T, D); wq/wk/wv: (D, D) in nn.Linear (out, in) layout; b*: (D,)."""
    B, T, D = x.shape
    inv_scale = 1.0 / math.sqrt(D)

    # nn.Linear computes x @ W.T + b.  Pre-transpose, fold 1/sqrt(D) into the
    # Q projection, and fuse Q/K/V into a single (D, 3D) weight + (1, 3D) bias.
    wqkv = jnp.concatenate([wq.T * inv_scale, wk.T, wv.T],
                           axis=1).astype(jnp.bfloat16)
    bqkv = jnp.concatenate([bq * inv_scale, bk, bv]).reshape(1, 3 * D)
    bqkv = bqkv.astype(jnp.float32)

    BB = _pick_batch_block(B, T)
    TQ = _pick_q_tile(T)
    vmem_limit = _vmem_limit_bytes(BB, T, D, TQ, x.dtype.itemsize)

    def _call(flat_out, single_buffer_weights):
        kernel = functools.partial(_attention_kernel, bb=BB, seq=T, dim=D,
                                   tq=TQ, flat_out=flat_out)
        wb_kwargs = (dict(pipeline_mode=pl.Buffered(1))
                     if single_buffer_weights else {})
        x_spec = pl.BlockSpec((BB, T, D), lambda b: (b, 0, 0))
        w_spec = pl.BlockSpec((D, 3 * D), lambda b: (0, 0), **wb_kwargs)
        b_spec = pl.BlockSpec((1, 3 * D), lambda b: (0, 0), **wb_kwargs)

        if flat_out:
            out_shape = jax.ShapeDtypeStruct((B, T * D), x.dtype)
            out_spec = pl.BlockSpec((BB, T * D), lambda b: (b, 0))
        else:
            out_shape = jax.ShapeDtypeStruct((B, T, D), x.dtype)
            out_spec = pl.BlockSpec((BB, T, D), lambda b: (b, 0, 0))

        out = pl.pallas_call(
            kernel,
            out_shape=out_shape,
            grid_spec=pltpu.PrefetchScalarGridSpec(
                num_scalar_prefetch=0,
                grid=(B // BB,),
                in_specs=[x_spec, w_spec, b_spec],
                out_specs=out_spec,
            ),
            compiler_params=pltpu.CompilerParams(
                dimension_semantics=("parallel",),
                vmem_limit_bytes=vmem_limit,
            ),
        )(x, wqkv, bqkv)
        return out.reshape(B, T, D) if flat_out else out

    # Config ladder: most optimized first, known-good layout last.  An optional
    # layout optimization that fails to lower degrades gracefully instead of
    # killing the run.
    configs = []
    if D % 128 != 0:
        configs.append((True, True))    # lane-dense flat output + 1-buf weights
    configs.append((False, True))       # 3-D output + 1-buf weights
    configs.append((False, False))      # known-good fallback
    last_err = None
    for flat_out, single_buf in configs:
        try:
            return _call(flat_out, single_buf)
        except Exception as e:          # toolchain-dependent lowering support
            last_err = e
    raise last_err


def _reference(x, wq, bq, wk, bk, wv, bv):
    D = x.shape[-1]
    q = x @ wq.T + bq
    k = x @ wk.T + bk
    v = x @ wv.T + bv
    scores = (q @ jnp.swapaxes(k, -2, -1)) / math.sqrt(D)
    attn = jax.nn.softmax(scores, axis=-1)
    return attn @ v


if __name__ == "__main__":
    B, T, D = 2, 8, 32
    key = jax.random.PRNGKey(0)
    kx, kq, kbq, kk, kbk, kv, kbv = jax.random.split(key, 7)

    x = jax.random.normal(kx, (B, T, D), dtype=jnp.float32)

    # Deterministic "nn.Linear"-shaped parameters (weight: (out,in), bias: (out,))
    bound = 1.0 / math.sqrt(D)
    wq = jax.random.uniform(kq, (D, D), minval=-bound, maxval=bound, dtype=jnp.float32)
    bq = jax.random.uniform(kbq, (D,), minval=-bound, maxval=bound, dtype=jnp.float32)
    wk = jax.random.uniform(kk, (D, D), minval=-bound, maxval=bound, dtype=jnp.float32)
    bk = jax.random.uniform(kbk, (D,), minval=-bound, maxval=bound, dtype=jnp.float32)
    wv = jax.random.uniform(kv, (D, D), minval=-bound, maxval=bound, dtype=jnp.float32)
    bv = jax.random.uniform(kbv, (D,), minval=-bound, maxval=bound, dtype=jnp.float32)

    out = temporal_attention(x, wq, bq, wk, bk, wv, bv)
    out = jax.block_until_ready(out)

    ref = _reference(x, wq, bq, wk, bk, wv, bv)
    assert out.shape == (B, T, D)
    # bf16 MXU inputs + approx reciprocal -> looser tolerance than pure f32
    assert jnp.allclose(out, ref, atol=3e-2, rtol=3e-2), "mismatch vs reference"

    print("KERNEL_OK")
</pallas_src>

<mosaic_0001>
module attributes {stable_mosaic.version = 11 : i64} {
  func.func @_attention_kernel(%arg0: i32, %arg1: memref<1x8x32xf32, #tpu.memory_space<vmem>>, %arg2: memref<32x96xbf16, #tpu.memory_space<vmem>>, %arg3: memref<1x96xf32, #tpu.memory_space<vmem>>, %arg4: memref<1x8x32xf32, #tpu.memory_space<vmem>>) attributes {dimension_semantics = [#tpu.dimension_semantics<parallel>], iteration_bounds = array<i64: 2>, scalar_prefetch = 0 : i64, scratch_operands = 0 : i64, tpu.core_type = #tpu.core_type<tc>, window_params = [{transform_indices = @transform_0, window_bounds = array<i64: 1, 8, 32>}, {pipeline_mode = #tpu.pipeline_mode<synchronous>, transform_indices = @transform_1, window_bounds = array<i64: 32, 96>}, {pipeline_mode = #tpu.pipeline_mode<synchronous>, transform_indices = @transform_2, window_bounds = array<i64: 1, 96>}, {transform_indices = @transform_3, window_bounds = array<i64: 1, 8, 32>}]} {
    %c0 = arith.constant 0 : index
    %c0_0 = arith.constant 0 : index
    %c0_1 = arith.constant 0 : index
    %0 = vector.load %arg1[%c0, %c0_0, %c0_1] : memref<1x8x32xf32, #tpu.memory_space<vmem>>, vector<1x8x32xf32>
    %1 = vector.shape_cast %0 : vector<1x8x32xf32> to vector<8x32xf32>
    %2 = arith.truncf %1 : vector<8x32xf32> to vector<8x32xbf16>
    %c0_2 = arith.constant 0 : index
    %c0_3 = arith.constant 0 : index
    %3 = vector.load %arg2[%c0_2, %c0_3] : memref<32x96xbf16, #tpu.memory_space<vmem>>, vector<32x96xbf16>
    %cst = arith.constant dense<0.000000e+00> : vector<8x96xf32>
    %4 = tpu.matmul %2, %3, %cst {dimension_numbers = #tpu.dot_dimension_numbers<[1], [0], [0], [1], [0, 0, 1, 1], [], []>} : vector<8x32xbf16>, vector<32x96xbf16>, vector<8x96xf32> -> vector<8x96xf32>
    %c0_4 = arith.constant 0 : index
    %c0_5 = arith.constant 0 : index
    %5 = vector.load %arg3[%c0_4, %c0_5] : memref<1x96xf32, #tpu.memory_space<vmem>>, vector<1x96xf32>
    %6 = vector.broadcast %5 : vector<1x96xf32> to vector<8x96xf32>
    %7 = arith.addf %4, %6 : vector<8x96xf32>
    %8 = vector.shape_cast %7 : vector<8x96xf32> to vector<1x8x96xf32>
    %9 = vector.extract_strided_slice %8 {offsets = [0, 0, 0], sizes = [1, 8, 32], strides = [1, 1, 1]} : vector<1x8x96xf32> to vector<1x8x32xf32>
    %10 = arith.truncf %9 : vector<1x8x32xf32> to vector<1x8x32xbf16>
    %11 = vector.extract_strided_slice %8 {offsets = [0, 0, 32], sizes = [1, 8, 32], strides = [1, 1, 1]} : vector<1x8x96xf32> to vector<1x8x32xf32>
    %12 = arith.truncf %11 : vector<1x8x32xf32> to vector<1x8x32xbf16>
    %13 = vector.extract_strided_slice %8 {offsets = [0, 0, 64], sizes = [1, 8, 32], strides = [1, 1, 1]} : vector<1x8x96xf32> to vector<1x8x32xf32>
    %14 = arith.truncf %13 : vector<1x8x32xf32> to vector<1x8x32xbf16>
    "tpu.trace_start"() <{level = 10 : i32, message = "bqd,bkd->bqk"}> : () -> ()
    %cst_6 = arith.constant dense<0.000000e+00> : vector<1x8x8xf32>
    %15 = tpu.matmul %10, %12, %cst_6 {dimension_numbers = #tpu.dot_dimension_numbers<[2], [2], [1], [1], [0, 0, 0, 1, 1, 1], [0], [0]>} : vector<1x8x32xbf16>, vector<1x8x32xbf16>, vector<1x8x8xf32> -> vector<1x8x8xf32>
    "tpu.trace_stop"() : () -> ()
    %cst_7 = arith.constant dense<0xFF800000> : vector<1x8xf32>
    %16 = vector.multi_reduction <maximumf>, %15, %cst_7 [2] : vector<1x8x8xf32> to vector<1x8xf32>
    %17 = vector.shape_cast %16 : vector<1x8xf32> to vector<1x8x1xf32>
    %18 = vector.broadcast %17 : vector<1x8x1xf32> to vector<1x8x8xf32>
    %19 = arith.subf %15, %18 : vector<1x8x8xf32>
    %20 = math.exp %19 : vector<1x8x8xf32>
    %cst_8 = arith.constant dense<0.000000e+00> : vector<1x8xf32>
    %21 = vector.multi_reduction <add>, %20, %cst_8 [2] : vector<1x8x8xf32> to vector<1x8xf32>
    %22 = vector.shape_cast %21 : vector<1x8xf32> to vector<1x8x1xf32>
    %23 = arith.truncf %20 : vector<1x8x8xf32> to vector<1x8x8xbf16>
    "tpu.trace_start"() <{level = 10 : i32, message = "bqk,bkd->bqd"}> : () -> ()
    %cst_9 = arith.constant dense<0.000000e+00> : vector<1x8x32xf32>
    %24 = tpu.matmul %23, %14, %cst_9 {dimension_numbers = #tpu.dot_dimension_numbers<[2], [1], [1], [2], [0, 0, 0, 1, 1, 2], [0], [0]>} : vector<1x8x8xbf16>, vector<1x8x32xbf16>, vector<1x8x32xf32> -> vector<1x8x32xf32>
    "tpu.trace_stop"() : () -> ()
    %25 = tpu.reciprocal %22 {approx = true} : vector<1x8x1xf32> -> vector<1x8x1xf32>
    %26 = vector.broadcast %25 : vector<1x8x1xf32> to vector<1x8x32xf32>
    %27 = arith.mulf %24, %26 : vector<1x8x32xf32>
    %c0_10 = arith.constant 0 : index
    %c0_11 = arith.constant 0 : index
    %c0_12 = arith.constant 0 : index
    %28 = vector.load %arg4[%c0_10, %c0_11, %c0_12] : memref<1x8x32xf32, #tpu.memory_space<vmem>>, vector<1x8x32xf32>
    tpu.vector_store %arg4[%c0_10, %c0_11, %c0_12], %27 {strides = array<i32>} : memref<1x8x32xf32, #tpu.memory_space<vmem>>, vector<1x8x32xf32>,
    return
  }
  func.func @transform_0(%arg0: i32) -> (i32, i32, i32) {
    %c0_i32 = arith.constant 0 : i32
    %c0_i32_0 = arith.constant 0 : i32
    %c0_i32_1 = arith.constant 0 : i32
    return %arg0, %c0_i32, %c0_i32_0 : i32, i32, i32
  }
  func.func @transform_1(%arg0: i32) -> (i32, i32) {
    %c0_i32 = arith.constant 0 : i32
    %c0_i32_0 = arith.constant 0 : i32
    %c0_i32_1 = arith.constant 0 : i32
    return %c0_i32, %c0_i32_0 : i32, i32
  }
  func.func @transform_2(%arg0: i32) -> (i32, i32) {
    %c0_i32 = arith.constant 0 : i32
    %c0_i32_0 = arith.constant 0 : i32
    %c0_i32_1 = arith.constant 0 : i32
    return %c0_i32, %c0_i32_0 : i32, i32
  }
  func.func @transform_3(%arg0: i32) -> (i32, i32, i32) {
    %c0_i32 = arith.constant 0 : i32
    %c0_i32_0 = arith.constant 0 : i32
    %c0_i32_1 = arith.constant 0 : i32
    return %arg0, %c0_i32, %c0_i32_0 : i32, i32, i32
  }
}

module attributes {stable_mosaic.version = 11 : i64} {
  func.func @_attention_kernel(%arg0: i32, %arg1: memref<1x8x32xf32, #tpu.memory_space<vmem>>, %arg2: memref<32x96xbf16, #tpu.memory_space<vmem>>, %arg3: memref<1x96xf32, #tpu.memory_space<vmem>>, %arg4: memref<1x8x32xf32, #tpu.memory_space<vmem>>) attributes {dimension_semantics = [#tpu.dimension_semantics<parallel>], iteration_bounds = array<i64: 2>, scalar_prefetch = 0 : i64, scratch_operands = 0 : i64, tpu.core_type = #tpu.core_type<tc>, window_params = [{transform_indices = @transform_0, window_bounds = array<i64: 1, 8, 32>}, {pipeline_mode = #tpu.pipeline_mode<synchronous>, transform_indices = @transform_1, window_bounds = array<i64: 32, 96>}, {pipeline_mode = #tpu.pipeline_mode<synchronous>, transform_indices = @transform_2, window_bounds = array<i64: 1, 96>}, {transform_indices = @transform_3, window_bounds = array<i64: 1, 8, 32>}]} {
    %c0 = arith.constant 0 : index
    %c0_0 = arith.constant 0 : index
    %c0_1 = arith.constant 0 : index
    %0 = vector.load %arg1[%c0, %c0_0, %c0_1] : memref<1x8x32xf32, #tpu.memory_space<vmem>>, vector<1x8x32xf32>
    %1 = vector.shape_cast %0 : vector<1x8x32xf32> to vector<8x32xf32>
    %2 = arith.truncf %1 : vector<8x32xf32> to vector<8x32xbf16>
    %c0_2 = arith.constant 0 : index
    %c0_3 = arith.constant 0 : index
    %3 = vector.load %arg2[%c0_2, %c0_3] : memref<32x96xbf16, #tpu.memory_space<vmem>>, vector<32x96xbf16>
    %cst = arith.constant dense<0.000000e+00> : vector<8x96xf32>
    %4 = tpu.matmul %2, %3, %cst {dimension_numbers = #tpu.dot_dimension_numbers<[1], [0], [0], [1], [0, 0, 1, 1], [], []>} : vector<8x32xbf16>, vector<32x96xbf16>, vector<8x96xf32> -> vector<8x96xf32>
    %c0_4 = arith.constant 0 : index
    %c0_5 = arith.constant 0 : index
    %5 = vector.load %arg3[%c0_4, %c0_5] : memref<1x96xf32, #tpu.memory_space<vmem>>, vector<1x96xf32>
    %6 = vector.broadcast %5 : vector<1x96xf32> to vector<8x96xf32>
    %7 = arith.addf %4, %6 : vector<8x96xf32>
    %8 = vector.shape_cast %7 : vector<8x96xf32> to vector<1x8x96xf32>
    %9 = vector.extract_strided_slice %8 {offsets = [0, 0, 0], sizes = [1, 8, 32], strides = [1, 1, 1]} : vector<1x8x96xf32> to vector<1x8x32xf32>
    %10 = arith.truncf %9 : vector<1x8x32xf32> to vector<1x8x32xbf16>
    %11 = vector.extract_strided_slice %8 {offsets = [0, 0, 32], sizes = [1, 8, 32], strides = [1, 1, 1]} : vector<1x8x96xf32> to vector<1x8x32xf32>
    %12 = arith.truncf %11 : vector<1x8x32xf32> to vector<1x8x32xbf16>
    %13 = vector.extract_strided_slice %8 {offsets = [0, 0, 64], sizes = [1, 8, 32], strides = [1, 1, 1]} : vector<1x8x96xf32> to vector<1x8x32xf32>
    %14 = arith.truncf %13 : vector<1x8x32xf32> to vector<1x8x32xbf16>
    "tpu.trace_start"() <{level = 10 : i32, message = "bqd,bkd->bqk"}> : () -> ()
    %cst_6 = arith.constant dense<0.000000e+00> : vector<1x8x8xf32>
    %15 = tpu.matmul %10, %12, %cst_6 {dimension_numbers = #tpu.dot_dimension_numbers<[2], [2], [1], [1], [0, 0, 0, 1, 1, 1], [0], [0]>} : vector<1x8x32xbf16>, vector<1x8x32xbf16>, vector<1x8x8xf32> -> vector<1x8x8xf32>
    "tpu.trace_stop"() : () -> ()
    %cst_7 = arith.constant dense<0xFF800000> : vector<1x8xf32>
    %16 = vector.multi_reduction <maximumf>, %15, %cst_7 [2] : vector<1x8x8xf32> to vector<1x8xf32>
    %17 = vector.shape_cast %16 : vector<1x8xf32> to vector<1x8x1xf32>
    %18 = vector.broadcast %17 : vector<1x8x1xf32> to vector<1x8x8xf32>
    %19 = arith.subf %15, %18 : vector<1x8x8xf32>
    %20 = math.exp %19 : vector<1x8x8xf32>
    %cst_8 = arith.constant dense<0.000000e+00> : vector<1x8xf32>
    %21 = vector.multi_reduction <add>, %20, %cst_8 [2] : vector<1x8x8xf32> to vector<1x8xf32>
    %22 = vector.shape_cast %21 : vector<1x8xf32> to vector<1x8x1xf32>
    %23 = arith.truncf %20 : vector<1x8x8xf32> to vector<1x8x8xbf16>
    "tpu.trace_start"() <{level = 10 : i32, message = "bqk,bkd->bqd"}> : () -> ()
    %cst_9 = arith.constant dense<0.000000e+00> : vector<1x8x32xf32>
    %24 = tpu.matmul %23, %14, %cst_9 {dimension_numbers = #tpu.dot_dimension_numbers<[2], [1], [1], [2], [0, 0, 0, 1, 1, 2], [0], [0]>} : vector<1x8x8xbf16>, vector<1x8x32xbf16>, vector<1x8x32xf32> -> vector<1x8x32xf32>
    "tpu.trace_stop"() : () -> ()
    %25 = tpu.reciprocal %22 {approx = true} : vector<1x8x1xf32> -> vector<1x8x1xf32>
    %26 = vector.broadcast %25 : vector<1x8x1xf32> to vector<1x8x32xf32>
    %27 = arith.mulf %24, %26 : vector<1x8x32xf32>
    %c0_10 = arith.constant 0 : index
    %c0_11 = arith.constant 0 : index
    %c0_12 = arith.constant 0 : index
    %28 = vector.load %arg4[%c0_10, %c0_11, %c0_12] : memref<1x8x32xf32, #tpu.memory_space<vmem>>, vector<1x8x32xf32>
    tpu.vector_store %arg4[%c0_10, %c0_11, %c0_12], %27 {strides = array<i32>} : memref<1x8x32xf32, #tpu.memory_space<vmem>>, vector<1x8x32xf32>,
    return
  }
  func.func @transform_0(%arg0: i32) -> (i32, i32, i32) {
    %c0_i32 = arith.constant 0 : i32
    %c0_i32_0 = arith.constant 0 : i32
    %c0_i32_1 = arith.constant 0 : i32
    return %arg0, %c0_i32, %c0_i32_0 : i32, i32, i32
  }
  func.func @transform_1(%arg0: i32) -> (i32, i32) {
    %c0_i32 = arith.constant 0 : i32
    %c0_i32_0 = arith.constant 0 : i32
    %c0_i32_1 = arith.constant 0 : i32
    return %c0_i32, %c0_i32_0 : i32, i32
  }
  func.func @transform_2(%arg0: i32) -> (i32, i32) {
    %c0_i32 = arith.constant 0 : i32
    %c0_i32_0 = arith.constant 0 : i32
    %c0_i32_1 = arith.constant 0 : i32
    return %c0_i32, %c0_i32_0 : i32, i32
  }
  func.func @transform_3(%arg0: i32) -> (i32, i32, i32) {
    %c0_i32 = arith.constant 0 : i32
    %c0_i32_0 = arith.constant 0 : i32
    %c0_i32_1 = arith.constant 0 : i32
    return %arg0, %c0_i32, %c0_i32_0 : i32, i32, i32
  }
}

</mosaic_0001>

<llo_original>
// kernel: tpu_custom_call.1
$region0: #{tpu_custom_call.1}
  #allocation0 [shape = 'u32[]', space=smem, size = 0x4, offset = 0x4, fixed_abs, tag = 'smem constant byte address 0x4 - core index']
  #allocation1 [shape = 'u32[144,128]{1,0:T(1,128)}', space=vmem, size = 0x12000, scoped, tag = 'internal scratch']
  %s0 = inlined_call_operand.hbm [shape: f32[2,8,32], index: 0, kind: input, shape index: {}]
  %s1 = inlined_call_operand.hbm [shape: bf16[32,96], index: 1, kind: input, shape index: {}]
  %s2 = inlined_call_operand.vmem [shape: f32[1,96], index: 2, kind: input, shape index: {}]
  %s3 = inlined_call_operand.hbm [shape: f32[2,8,32], index: 3, kind: output, shape index: {}]
  %s4 = sld [smem:[#allocation0]]
  $region53: #{tpu_custom_call.1} parent=0
    _
  %s6 = ssub.s32 1, %s4
  %s7 = scalar_select 0, %s6, %s4
  $region1: #{tpu_custom_call.1} parent=0
    #allocation2 [shape = 'u8[8192]{0}', space=vmem, size = 0x2000, scoped, tag = 'input window, operand 0']
    #allocation3 [shape = 's32[2]{0}', space=sflag, size = 0x8, scoped, tag = 'scoped memory for tpu_custom_call.1']
    #allocation4 [shape = 's32[2]{0}', space=sflag, size = 0x8, scoped, tag = 'scoped memory for tpu_custom_call.1']
    #allocation5 [shape = 'u8[8192]{0}', space=vmem, size = 0x2000, scoped, tag = 'input window, operand 1, single buffered']
    #allocation6 [shape = 's32[1]{0}', space=sflag, size = 0x4, scoped, tag = 'scoped memory for tpu_custom_call.1']
    #allocation7 [shape = 'u8[8192]{0}', space=vmem, size = 0x2000, scoped, tag = 'output window, operand 0']
    %8 = vsyncpa [#allocation3], 0
    %s9 = scalar_lea.sflag [#allocation3], 1
    %10 = vsyncpa %s9, 0
    %11 = vsyncpa [#allocation6], 0
    %12 = vsyncpa [#allocation4], 0
    %s13 = scalar_lea.sflag [#allocation4], 1
    %14 = vsyncpa %s13, 0
    loop: start=0, step=1, limit=4
    $region2: #{tpu_custom_call.1} parent=1 // loop_pre_header
      _
    $region3: #{tpu_custom_call.1} parent=1 // loop_header
      %s16 = sphi 0, %s20
      %p17 = scmp.ge.s32.totalorder %s16, 4
      %s26 = sphi 0, %s28
      %s29 = sphi 0, %s26
      %s30 = sphi 0, %s29
      %s46 = sphi 0, %s30
      %s50 = sphi 0, %s50
      %s52 = sphi 0, %s50
      %s53 = sphi 0, %s52
      %s67 = sphi 0, %s53
      %s71 = sphi 0, %s71
      %s73 = sphi 0, %s71
      %s74 = sphi 0, %s73
      %s88 = sphi 0, %s74
      %s94 = sphi 0, %s96
      %s97 = sphi 0, %s94
      %s98 = sphi 0, %s97
      %s114 = sphi 0, %s98
    $region4: #{tpu_custom_call.1} parent=1 // loop_header_branch
      %19 = sbr.rel (%p17) target = $region8
    $region5: #{tpu_custom_call.1} parent=1 // loop_body
      %s21 = ssub.s32 %s16, 1
      %s22 = ssub.s32 %s16, 2
      %s23 = sadd.s32 %s16, 1
      %s24 = ssub.s32 %s16, %s23
      %p25 = scmp.eq.s32.totalorder %s24, 0
      %s27 = sadd.s32 %s26, 1
      %s28 = scalar_select %p25, %s26, %s27
      %p31 = pneg %p25
      %p32 = scmp.eq.s32.totalorder %s16, 1
      %p33 = por %p31, %p32
      %p34 = scmp.ne.s32.totalorder %s26, %s29
      %p35 = scmp.eq.s32.totalorder %s16, 0
      %p36 = por %p34, %p35
      %p37 = scmp.ne.s32.totalorder %s26, %s29
      %p38 = scmp.eq.s32.totalorder %s21, 1
      %p39 = por %p37, %p38
      %p40 = scmp.ne.s32.totalorder %s29, %s30
      %p41 = scmp.eq.s32.totalorder %s21, 0
      %p42 = por %p40, %p41
      %p43 = scmp.ne.s32.totalorder %s29, %s30
      %p44 = scmp.eq.s32.totalorder %s22, 1
      %p45 = por %p43, %p44
      %p47 = scmp.ne.s32.totalorder %s30, %s46
      %p48 = scmp.eq.s32.totalorder %s22, 0
      %p49 = por %p47, %p48
      %s51 = sadd.s32 %s50, 1
      %p54 = scmp.eq.s32.totalorder %s16, 1
      %p55 = scmp.ne.s32.totalorder %s50, %s52
      %p56 = scmp.eq.s32.totalorder %s16, 0
      %p57 = por %p55, %p56
      %p58 = scmp.ne.s32.totalorder %s50, %s52
      %p59 = scmp.eq.s32.totalorder %s21, 1
      %p60 = por %p58, %p59
      %p61 = scmp.ne.s32.totalorder %s52, %s53
      %p62 = scmp.eq.s32.totalorder %s21, 0
      %p63 = por %p61, %p62
      %p64 = scmp.ne.s32.totalorder %s52, %s53
      %p65 = scmp.eq.s32.totalorder %s22, 1
      %p66 = por %p64, %p65
      %p68 = scmp.ne.s32.totalorder %s53, %s67
      %p69 = scmp.eq.s32.totalorder %s22, 0
      %p70 = por %p68, %p69
      %s72 = sadd.s32 %s71, 1
      %p75 = scmp.eq.s32.totalorder %s16, 1
      %p76 = scmp.ne.s32.totalorder %s71, %s73
      %p77 = scmp.eq.s32.totalorder %s16, 0
      %p78 = por %p76, %p77
      %p79 = scmp.ne.s32.totalorder %s71, %s73
      %p80 = scmp.eq.s32.totalorder %s21, 1
      %p81 = por %p79, %p80
      %p82 = scmp.ne.s32.totalorder %s73, %s74
      %p83 = scmp.eq.s32.totalorder %s21, 0
      %p84 = por %p82, %p83
      %p85 = scmp.ne.s32.totalorder %s73, %s74
      %p86 = scmp.eq.s32.totalorder %s22, 1
      %p87 = por %p85, %p86
      %p89 = scmp.ne.s32.totalorder %s74, %s88
      %p90 = scmp.eq.s32.totalorder %s22, 0
      %p91 = por %p89, %p90
      %s92 = ssub.s32 %s16, %s23
      %p93 = scmp.eq.s32.totalorder %s92, 0
      %s95 = sadd.s32 %s94, 1
      %s96 = scalar_select %p93, %s94, %s95
      %p99 = pneg %p93
      %p100 = scmp.eq.s32.totalorder %s16, 1
      %p101 = por %p99, %p100
      %p102 = scmp.ne.s32.totalorder %s94, %s97
      %p103 = scmp.eq.s32.totalorder %s16, 0
      %p104 = por %p102, %p103
      %p105 = scmp.ne.s32.totalorder %s94, %s97
      %p106 = scmp.eq.s32.totalorder %s21, 1
      %p107 = por %p105, %p106
      %p108 = scmp.ne.s32.totalorder %s97, %s98
      %p109 = scmp.eq.s32.totalorder %s21, 0
      %p110 = por %p108, %p109
      %p111 = scmp.ne.s32.totalorder %s97, %s98
      %p112 = scmp.eq.s32.totalorder %s22, 1
      %p113 = por %p111, %p112
      %p115 = scmp.ne.s32.totalorder %s98, %s114
      %p116 = scmp.eq.s32.totalorder %s22, 0
      %p117 = por %p115, %p116
      %p118 = scmp.le.s32.totalorder 1, %s16
      %p119 = scmp.lt.s32.totalorder %s16, 3
      %p120 = pnand %p118, %p119
      %p121 = pneg %p120
      // Predicated region
      $region9: #{tpu_custom_call.1} parent=5 // pred_check
        _
      $region10: #{tpu_custom_call.1} parent=5 // pred_check_branch
        %123 = sbr.rel (%p120) target = $region12
      $region11: #{tpu_custom_call.1} parent=5 // pred_region
        %s124 = ssub.s32 %s16, 1
        // Predicated region
        $region13: #{tpu_custom_call.1} parent=11 // pred_check
          %p125 = pneg %p63
        $region14: #{tpu_custom_call.1} parent=11 // pred_check_branch
          %127 = sbr.rel (%p125) target = $region16
        $region15: #{tpu_custom_call.1} parent=11 // pred_region
          %s129 = ssub.s32 256, 256
          %130 = vsyncadd [#allocation6], %s129
          %s131 = sshll.u32 [#allocation5], 4
          %s132 = int_to_ptr.vmem [resolvable:$true] %s131
          %137 = dma.hbm_to_vmem [thread:$0]  %s1, 256, %s132, [#allocation6], 64, 64, 4
        $region16: #{tpu_custom_call.1} parent=11 // pred_fallthru
          _
        // Predicated region
        $region17: #{tpu_custom_call.1} parent=11 // pred_check
          %p138 = pneg %p84
        $region18: #{tpu_custom_call.1} parent=11 // pred_check_branch
          %140 = sbr.rel (%p138) target = $region20
        $region19: #{tpu_custom_call.1} parent=11 // pred_region
          _
        $region20: #{tpu_custom_call.1} parent=11 // pred_fallthru
          _
      $region12: #{tpu_custom_call.1} parent=5 // pred_fallthru
        _
      %p141 = scmp.lt.s32.totalorder %s16, 2
      // Predicated region
      $region21: #{tpu_custom_call.1} parent=5 // pred_check
        %p142 = pneg %p141
      $region22: #{tpu_custom_call.1} parent=5 // pred_check_branch
        %144 = sbr.rel (%p142) target = $region24
      $region23: #{tpu_custom_call.1} parent=5 // pred_region
        // Predicated region
        $region25: #{tpu_custom_call.1} parent=23 // pred_check
          %p145 = pneg %p36
        $region26: #{tpu_custom_call.1} parent=23 // pred_check_branch
          %147 = sbr.rel (%p145) target = $region28
        $region27: #{tpu_custom_call.1} parent=23 // pred_region
          %s148 = sand.u32 %s26, 1
          %s149 = scalar_lea.sflag [#allocation3], %s148
          %s150 = sand.u32 %s26, 1
          %s151 = smul.addr %s150, 8
          %s152 = scalar_lea.vmem [#allocation2], %s151
          %s154 = ssub.s32 128, 128
          %155 = vsyncadd %s149, %s154
          %s156 = smul.addr %s16, 128
          %s157 = scalar_lea.hbm %s0, %s156
          %s159 = sshll.u32 %s152, 4
          %s160 = int_to_ptr.vmem [resolvable:$true] %s159
          %162 = dma.hbm_to_vmem [thread:$0]  %s157, 128, %s160, %s149
        $region28: #{tpu_custom_call.1} parent=23 // pred_fallthru
          _
      $region24: #{tpu_custom_call.1} parent=5 // pred_fallthru
        _
      %p163 = scmp.le.s32.totalorder 1, %s16
      %p164 = scmp.lt.s32.totalorder %s16, 3
      %p165 = pnand %p163, %p164
      %p166 = pneg %p165
      // Predicated region
      $region29: #{tpu_custom_call.1} parent=5 // pred_check
        _
      $region30: #{tpu_custom_call.1} parent=5 // pred_check_branch
        %168 = sbr.rel (%p165) target = $region32
      $region31: #{tpu_custom_call.1} parent=5 // pred_region
        %s169 = ssub.s32 %s16, 1
        %s170 = sand.u32 %s29, 1
        %s171 = scalar_lea.sflag [#allocation3], %s170
        %s172 = sand.u32 %s29, 1
        %s173 = smul.addr %s172, 8
        %s174 = scalar_lea.vmem [#allocation2], %s173
        // Predicated region
        $region33: #{tpu_custom_call.1} parent=31 // pred_check
          %p175 = pneg %p42
        $region34: #{tpu_custom_call.1} parent=31 // pred_check_branch
          %177 = sbr.rel (%p175) target = $region36
        $region35: #{tpu_custom_call.1} parent=31 // pred_region
          %178 = dma.done %s171, 128
        $region36: #{tpu_custom_call.1} parent=31 // pred_fallthru
          _
        // Predicated region
        $region37: #{tpu_custom_call.1} parent=31 // pred_check
          %p179 = pneg %p63
        $region38: #{tpu_custom_call.1} parent=31 // pred_check_branch
          %181 = sbr.rel (%p179) target = $region40
        $region39: #{tpu_custom_call.1} parent=31 // pred_region
          %182 = dma.done [#allocation6], 256
        $region40: #{tpu_custom_call.1} parent=31 // pred_fallthru
          _
        %s183 = sand.u32 %s29, 1
        %s184 = scalar_lea.sflag [#allocation3], %s183
        %s185 = sand.u32 %s29, 1
        %s186 = smul.addr %s185, 8
        %s187 = scalar_lea.vmem [#allocation2], %s186
        %p188 = pneg %p42
        %p189 = pneg %p39
        %p190 = pneg %p63
        %p191 = pneg %p60
        %p192 = pneg %p84
        %p193 = pneg %p81
        %p194 = pneg %p110
        %p195 = pneg %p107
        %s196 = sand.u32 %s97, 1
        %s197 = scalar_lea.sflag [#allocation4], %s196
        %s198 = sand.u32 %s97, 1
        %s199 = smul.addr %s198, 8
        %s200 = scalar_lea.vmem [#allocation7], %s199
        %v202 = vld [vmem:[%s174] sm:$0xff]
        %v203 = vpack.c.bf16 %v202, %v202
        %v204 = vld [vmem:[#allocation5] sm:$0xf]
        %v205 = vld [vmem:[#allocation5 + $0x4] sm:$0xf]
        %v206 = vld [vmem:[#allocation5 + $0x8] sm:$0xf]
        %v207 = vld [vmem:[#allocation5 + $0xc] sm:$0xf]
        %v208 = vld [vmem:[%s2] sm:$0x1]
        %v210 = vlaneseq
        %v211 = vshrl.u32 %v210, 7
        %v212 = vsub.s32 0, %v211
        %v213 = vrot.slane %v208, %v212
        %v219 = vunpack.c.l.b16 %v204
        %v220 = vunpack.c.l.b16 %v205
        %v221 = vunpack.c.l.b16 %v206
        %v222 = vunpack.c.l.b16 %v207
        %v223 = vpack.c.b16 %v220, %v219
        %v224 = vpack.c.b16 %v222, %v221
        %vm227 = vcmask 261120
        %v229 = vsel %vm227, %v203, 0
        %231 = vmatprep.subr.bf16.mxu0 0
        %232 = vmatpush1.bf16.msra.mxu0 %v223
        %233 = vmatprep.subr.bf16.mxu0 0
        %234 = vmatpush1.bf16.msra.mxu0 %v224
        %235 = vmatprep.subr.bf16.mxu0 0
        %236 = vmatpush1.bf16.msra.mxu0 0
        %237 = vmatprep.subr.bf16.mxu0 0
        %238 = vmatpush1.bf16.msra.mxu0 0
        %239 = vmatprep.subr.bf16.mxu0 0
        %240 = vmatpush1.bf16.msra.mxu0 0
        %241 = vmatprep.subr.bf16.mxu0 0
        %242 = vmatpush1.bf16.msra.mxu0 0
        %243 = vmatprep.subr.bf16.mxu0 0
        %244 = vmatpush1.bf16.msra.mxu0 0
        %245 = vmatprep.subr.bf16.mxu0 0
        %246 = vmatpush1.bf16.msra.mxu0 0
        %247 = vmatprep.subr.bf16.mxu0 0
        %248 = vmatpush1.bf16.msra.mxu0 0
        %249 = vmatprep.subr.bf16.mxu0 0
        %250 = vmatpush1.bf16.msra.mxu0 0
        %251 = vmatprep.subr.bf16.mxu0 0
        %252 = vmatpush1.bf16.msra.mxu0 0
        %253 = vmatprep.subr.bf16.mxu0 0
        %254 = vmatpush1.bf16.msra.mxu0 0
        %255 = vmatprep.subr.bf16.mxu0 0
        %256 = vmatpush1.bf16.msra.mxu0 0
        %257 = vmatprep.subr.bf16.mxu0 0
        %258 = vmatpush1.bf16.msra.mxu0 0
        %259 = vmatprep.subr.bf16.mxu0 0
        %260 = vmatpush1.bf16.msra.mxu0 0
        %261 = vmatprep.subr.bf16.mxu0 0
        %262 = vmatpush1.bf16.msra.mxu0 0
        %263 = vmatprep.mubr.bf16.mxu0 0
        %264 = vmatmul.mubr.bf16.gmra.mrb[0].mxu0 %v229
        %v265 = vpop.f32.mrb[0].mxu0
        %v266 = vadd.f32 %v213, %v265
        %v267 = vpop.f32.mrb[0].mxu0
        %v268 = vpop.f32.mrb[0].mxu0
        %v269 = vpop.f32.mrb[0].mxu0
        %270 = vdwg.mxu0
        %v271 = vpack.c.bf16 %v266, %v266
        %273 = vrot.lane.b32.xlu0 %v271, 96
        %v274 = vpop.permute.xlu0 %273
        %v276 = vsel %vm227, %v271, 0
        %v279 = vsel %vm227, %v274, 0
        %281 = vmatprep.subr.bf16.mxu0 0
        %282 = vmatpush1.bf16.xpose.msra.mxu0 %v279
        %283 = vmatprep.subr.bf16.mxu0 0
        %284 = vmatpush1.bf16.xpose.msra.mxu0 0
        %285 = vmatprep.subr.bf16.mxu0 0
        %286 = vmatpush1.bf16.xpose.msra.mxu0 0
        %287 = vmatprep.subr.bf16.mxu0 0
        %288 = vmatpush1.bf16.xpose.msra.mxu0 0
        %289 = vmatprep.subr.bf16.mxu0 0
        %290 = vmatpush1.bf16.xpose.msra.mxu0 0
        %291 = vmatprep.subr.bf16.mxu0 0
        %292 = vmatpush1.bf16.xpose.msra.mxu0 0
        %293 = vmatprep.subr.bf16.mxu0 0
        %294 = vmatpush1.bf16.xpose.msra.mxu0 0
        %295 = vmatprep.subr.bf16.mxu0 0
        %296 = vmatpush1.bf16.xpose.msra.mxu0 0
        %297 = vmatprep.subr.bf16.mxu0 0
        %298 = vmatpush1.bf16.xpose.msra.mxu0 0
        %299 = vmatprep.subr.bf16.mxu0 0
        %300 = vmatpush1.bf16.xpose.msra.mxu0 0
        %301 = vmatprep.subr.bf16.mxu0 0
        %302 = vmatpush1.bf16.xpose.msra.mxu0 0
        %303 = vmatprep.subr.bf16.mxu0 0
        %304 = vmatpush1.bf16.xpose.msra.mxu0 0
        %305 = vmatprep.subr.bf16.mxu0 0
        %306 = vmatpush1.bf16.xpose.msra.mxu0 0
        %307 = vmatprep.subr.bf16.mxu0 0
        %308 = vmatpush1.bf16.xpose.msra.mxu0 0
        %309 = vmatprep.subr.bf16.mxu0 0
        %310 = vmatpush1.bf16.xpose.msra.mxu0 0
        %311 = vmatprep.subr.bf16.mxu0 0
        %312 = vmatpush1.bf16.xpose.msra.mxu0 0
        %313 = vmatprep.mubr.bf16.mxu0 0
        %314 = vmatmul.mubr.bf16.gmra.mrb[0].mxu0 %v276
        %v315 = vpop.f32.mrb[0].mxu0
        %v316 = vadd.f32 0.0, %v315
        %v317 = vpop.f32.mrb[0].mxu0
        %v318 = vpop.f32.mrb[0].mxu0
        %v319 = vpop.f32.mrb[0].mxu0
        %320 = vdwg.mxu0
        %vm321 = vcmask 64512
        %v322 = vsel %vm321, %v316, -inf
        %323 = vmax.xlane.f32.xlu0 %v322
        %v324 = vpop.xlane.xlu0 %323
        %v325 = vsub.f32 %v316, %v324
        %v326 = vmul.f32 %v325, 1.442695
        %v327 = vpow.pop %v326
        %v328 = vsel %vm321, %v327, 0.0
        %329 = vadd.xlane.f32.xlu0 %v328
        %v330 = vpop.xlane.xlu0 %329
        %v331 = vpack.c.bf16 %v327, %v327
        %332 = vrot.lane.b32.xlu0 %v271, 64
        %v333 = vpop.permute.xlu0 %332
        %v335 = vsel %vm321, %v331, 0
        %vm337 = vcmask 1043456
        %v339 = vsel %vm337, %v333, 0
        %341 = vmatprep.subr.bf16.mxu0 0
        %342 = vmatpush1.bf16.msra.mxu0 %v339
        %343 = vmatprep.subr.bf16.mxu0 0
        %344 = vmatpush1.bf16.msra.mxu0 0
        %345 = vmatprep.subr.bf16.mxu0 0
        %346 = vmatpush1.bf16.msra.mxu0 0
        %347 = vmatprep.subr.bf16.mxu0 0
        %348 = vmatpush1.bf16.msra.mxu0 0
        %349 = vmatprep.subr.bf16.mxu0 0
        %350 = vmatpush1.bf16.msra.mxu0 0
        %351 = vmatprep.subr.bf16.mxu0 0
        %352 = vmatpush1.bf16.msra.mxu0 0
        %353 = vmatprep.subr.bf16.mxu0 0
        %354 = vmatpush1.bf16.msra.mxu0 0
        %355 = vmatprep.subr.bf16.mxu0 0
        %356 = vmatpush1.bf16.msra.mxu0 0
        %357 = vmatprep.subr.bf16.mxu0 0
        %358 = vmatpush1.bf16.msra.mxu0 0
        %359 = vmatprep.subr.bf16.mxu0 0
        %360 = vmatpush1.bf16.msra.mxu0 0
        %361 = vmatprep.subr.bf16.mxu0 0
        %362 = vmatpush1.bf16.msra.mxu0 0
        %363 = vmatprep.subr.bf16.mxu0 0
        %364 = vmatpush1.bf16.msra.mxu0 0
        %365 = vmatprep.subr.bf16.mxu0 0
        %366 = vmatpush1.bf16.msra.mxu0 0
        %367 = vmatprep.subr.bf16.mxu0 0
        %368 = vmatpush1.bf16.msra.mxu0 0
        %369 = vmatprep.subr.bf16.mxu0 0
        %370 = vmatpush1.bf16.msra.mxu0 0
        %371 = vmatprep.subr.bf16.mxu0 0
        %372 = vmatpush1.bf16.msra.mxu0 0
        %373 = vmatprep.mubr.bf16.mxu0 0
        %374 = vmatmul.mubr.bf16.gmra.mrb[0].mxu0 %v335
        %v375 = vpop.f32.mrb[0].mxu0
        %v376 = vadd.f32 0.0, %v375
        %v377 = vpop.f32.mrb[0].mxu0
        %v378 = vpop.f32.mrb[0].mxu0
        %v379 = vpop.f32.mrb[0].mxu0
        %380 = vdwg.mxu0
        %v381 = vrcp.pop %v330
        %v382 = vmul.f32 %v376, %v381
        %383 = vst.msk [vmem:[%s200] sm:$0xff] %vm227, %v382
        %s384 = sand.u32 %s97, 1
        %s385 = scalar_lea.sflag [#allocation4], %s384
        %s386 = sand.u32 %s97, 1
        %s387 = smul.addr %s386, 8
        %s388 = scalar_lea.vmem [#allocation7], %s387
        // Predicated region
        $region41: #{tpu_custom_call.1} parent=31 // pred_check
          %p389 = pneg %p107
        $region42: #{tpu_custom_call.1} parent=31 // pred_check_branch
          %391 = sbr.rel (%p389) target = $region44
        $region43: #{tpu_custom_call.1} parent=31 // pred_region
          %s393 = ssub.s32 128, 128
          %394 = vsyncadd %s385, %s393
          %s395 = smul.addr %s21, 128
          %s396 = scalar_lea.hbm %s3, %s395
          %s398 = sshll.u32 %s388, 4
          %s399 = int_to_ptr.vmem [resolvable:$true] %s398
          %401 = dma.vmem_to_hbm [thread:$0]  %s399, 128, %s396, %s385
        $region44: #{tpu_custom_call.1} parent=31 // pred_fallthru
          _
      $region32: #{tpu_custom_call.1} parent=5 // pred_fallthru
        _
      %p402 = scmp.le.s32.totalorder 2, %s16
      // Predicated region
      $region45: #{tpu_custom_call.1} parent=5 // pred_check
        %p403 = pneg %p402
      $region46: #{tpu_custom_call.1} parent=5 // pred_check_branch
        %405 = sbr.rel (%p403) target = $region48
      $region47: #{tpu_custom_call.1} parent=5 // pred_region
        %s406 = ssub.s32 %s16, 2
        // Predicated region
        $region49: #{tpu_custom_call.1} parent=47 // pred_check
          %p407 = pneg %p113
        $region50: #{tpu_custom_call.1} parent=47 // pred_check_branch
          %409 = sbr.rel (%p407) target = $region52
        $region51: #{tpu_custom_call.1} parent=47 // pred_region
          %s410 = sand.u32 %s98, 1
          %s411 = scalar_lea.sflag [#allocation4], %s410
          %s412 = sand.u32 %s98, 1
          %s413 = smul.addr %s412, 8
          %s414 = scalar_lea.vmem [#allocation7], %s413
          %415 = dma.done %s411, 128
        $region52: #{tpu_custom_call.1} parent=47 // pred_fallthru
          _
      $region48: #{tpu_custom_call.1} parent=5 // pred_fallthru
        _
    $region6: #{tpu_custom_call.1} parent=1 // loop_footer
      %s20 = sadd.s32 1, %s16
    $region7: #{tpu_custom_call.1} parent=1 // loop_footer_branch
      %15 = sbr.rel target = $region3
    $region8: #{tpu_custom_call.1} parent=1 // loop_exit
      _
    %416 = vsyncpa [#allocation3], 1
    %s417 = scalar_lea.sflag [#allocation3], 1
    %418 = vsyncpa %s417, 1
    %419 = vsyncpa [#allocation6], 1
    %420 = vsyncpa [#allocation4], 1
    %s421 = scalar_lea.sflag [#allocation4], 1
    %422 = vsyncpa %s421, 1

// kernel: tpu_custom_call.1
$region0: #{tpu_custom_call.1}
  #allocation0 [shape = 'u32[]', space=smem, size = 0x4, offset = 0x4, fixed_abs, tag = 'smem constant byte address 0x4 - core index']
  #allocation1 [shape = 'u32[144,128]{1,0:T(1,128)}', space=vmem, size = 0x12000, scoped, tag = 'internal scratch']
  %s0 = inlined_call_operand.hbm [shape: f32[2,8,32], index: 0, kind: input, shape index: {}]
  %s1 = inlined_call_operand.hbm [shape: bf16[32,96], index: 1, kind: input, shape index: {}]
  %s2 = inlined_call_operand.vmem [shape: f32[1,96], index: 2, kind: input, shape index: {}]
  %s3 = inlined_call_operand.hbm [shape: f32[2,8,32], index: 3, kind: output, shape index: {}]
  %s4 = sld [smem:[#allocation0]]
  $region53: #{tpu_custom_call.1} parent=0
    _
  %s6 = ssub.s32 1, %s4
  %s7 = scalar_select 0, %s6, %s4
  $region1: #{tpu_custom_call.1} parent=0
    #allocation2 [shape = 'u8[8192]{0}', space=vmem, size = 0x2000, scoped, tag = 'input window, operand 0']
    #allocation3 [shape = 's32[2]{0}', space=sflag, size = 0x8, scoped, tag = 'scoped memory for tpu_custom_call.1']
    #allocation4 [shape = 's32[2]{0}', space=sflag, size = 0x8, scoped, tag = 'scoped memory for tpu_custom_call.1']
    #allocation5 [shape = 'u8[8192]{0}', space=vmem, size = 0x2000, scoped, tag = 'input window, operand 1, single buffered']
    #allocation6 [shape = 's32[1]{0}', space=sflag, size = 0x4, scoped, tag = 'scoped memory for tpu_custom_call.1']
    #allocation7 [shape = 'u8[8192]{0}', space=vmem, size = 0x2000, scoped, tag = 'output window, operand 0']
    %8 = vsyncpa [#allocation3], 0
    %s9 = scalar_lea.sflag [#allocation3], 1
    %10 = vsyncpa %s9, 0
    %11 = vsyncpa [#allocation6], 0
    %12 = vsyncpa [#allocation4], 0
    %s13 = scalar_lea.sflag [#allocation4], 1
    %14 = vsyncpa %s13, 0
    loop: start=0, step=1, limit=4
    $region2: #{tpu_custom_call.1} parent=1 // loop_pre_header
      _
    $region3: #{tpu_custom_call.1} parent=1 // loop_header
      %s16 = sphi 0, %s20
      %p17 = scmp.ge.s32.totalorder %s16, 4
      %s26 = sphi 0, %s28
      %s29 = sphi 0, %s26
      %s30 = sphi 0, %s29
      %s46 = sphi 0, %s30
      %s50 = sphi 0, %s50
      %s52 = sphi 0, %s50
      %s53 = sphi 0, %s52
      %s67 = sphi 0, %s53
      %s71 = sphi 0, %s71
      %s73 = sphi 0, %s71
      %s74 = sphi 0, %s73
      %s88 = sphi 0, %s74
      %s94 = sphi 0, %s96
      %s97 = sphi 0, %s94
      %s98 = sphi 0, %s97
      %s114 = sphi 0, %s98
    $region4: #{tpu_custom_call.1} parent=1 // loop_header_branch
      %19 = sbr.rel (%p17) target = $region8
    $region5: #{tpu_custom_call.1} parent=1 // loop_body
      %s21 = ssub.s32 %s16, 1
      %s22 = ssub.s32 %s16, 2
      %s23 = sadd.s32 %s16, 1
      %s24 = ssub.s32 %s16, %s23
      %p25 = scmp.eq.s32.totalorder %s24, 0
      %s27 = sadd.s32 %s26, 1
      %s28 = scalar_select %p25, %s26, %s27
      %p31 = pneg %p25
      %p32 = scmp.eq.s32.totalorder %s16, 1
      %p33 = por %p31, %p32
      %p34 = scmp.ne.s32.totalorder %s26, %s29
      %p35 = scmp.eq.s32.totalorder %s16, 0
      %p36 = por %p34, %p35
      %p37 = scmp.ne.s32.totalorder %s26, %s29
      %p38 = scmp.eq.s32.totalorder %s21, 1
      %p39 = por %p37, %p38
      %p40 = scmp.ne.s32.totalorder %s29, %s30
      %p41 = scmp.eq.s32.totalorder %s21, 0
      %p42 = por %p40, %p41
      %p43 = scmp.ne.s32.totalorder %s29, %s30
      %p44 = scmp.eq.s32.totalorder %s22, 1
      %p45 = por %p43, %p44
      %p47 = scmp.ne.s32.totalorder %s30, %s46
      %p48 = scmp.eq.s32.totalorder %s22, 0
      %p49 = por %p47, %p48
      %s51 = sadd.s32 %s50, 1
      %p54 = scmp.eq.s32.totalorder %s16, 1
      %p55 = scmp.ne.s32.totalorder %s50, %s52
      %p56 = scmp.eq.s32.totalorder %s16, 0
      %p57 = por %p55, %p56
      %p58 = scmp.ne.s32.totalorder %s50, %s52
      %p59 = scmp.eq.s32.totalorder %s21, 1
      %p60 = por %p58, %p59
      %p61 = scmp.ne.s32.totalorder %s52, %s53
      %p62 = scmp.eq.s32.totalorder %s21, 0
      %p63 = por %p61, %p62
      %p64 = scmp.ne.s32.totalorder %s52, %s53
      %p65 = scmp.eq.s32.totalorder %s22, 1
      %p66 = por %p64, %p65
      %p68 = scmp.ne.s32.totalorder %s53, %s67
      %p69 = scmp.eq.s32.totalorder %s22, 0
      %p70 = por %p68, %p69
      %s72 = sadd.s32 %s71, 1
      %p75 = scmp.eq.s32.totalorder %s16, 1
      %p76 = scmp.ne.s32.totalorder %s71, %s73
      %p77 = scmp.eq.s32.totalorder %s16, 0
      %p78 = por %p76, %p77
      %p79 = scmp.ne.s32.totalorder %s71, %s73
      %p80 = scmp.eq.s32.totalorder %s21, 1
      %p81 = por %p79, %p80
      %p82 = scmp.ne.s32.totalorder %s73, %s74
      %p83 = scmp.eq.s32.totalorder %s21, 0
      %p84 = por %p82, %p83
      %p85 = scmp.ne.s32.totalorder %s73, %s74
      %p86 = scmp.eq.s32.totalorder %s22, 1
      %p87 = por %p85, %p86
      %p89 = scmp.ne.s32.totalorder %s74, %s88
      %p90 = scmp.eq.s32.totalorder %s22, 0
      %p91 = por %p89, %p90
      %s92 = ssub.s32 %s16, %s23
      %p93 = scmp.eq.s32.totalorder %s92, 0
      %s95 = sadd.s32 %s94, 1
      %s96 = scalar_select %p93, %s94, %s95
      %p99 = pneg %p93
      %p100 = scmp.eq.s32.totalorder %s16, 1
      %p101 = por %p99, %p100
      %p102 = scmp.ne.s32.totalorder %s94, %s97
      %p103 = scmp.eq.s32.totalorder %s16, 0
      %p104 = por %p102, %p103
      %p105 = scmp.ne.s32.totalorder %s94, %s97
      %p106 = scmp.eq.s32.totalorder %s21, 1
      %p107 = por %p105, %p106
      %p108 = scmp.ne.s32.totalorder %s97, %s98
      %p109 = scmp.eq.s32.totalorder %s21, 0
      %p110 = por %p108, %p109
      %p111 = scmp.ne.s32.totalorder %s97, %s98
      %p112 = scmp.eq.s32.totalorder %s22, 1
      %p113 = por %p111, %p112
      %p115 = scmp.ne.s32.totalorder %s98, %s114
      %p116 = scmp.eq.s32.totalorder %s22, 0
      %p117 = por %p115, %p116
      %p118 = scmp.le.s32.totalorder 1, %s16
      %p119 = scmp.lt.s32.totalorder %s16, 3
      %p120 = pnand %p118, %p119
      %p121 = pneg %p120
      // Predicated region
      $region9: #{tpu_custom_call.1} parent=5 // pred_check
        _
      $region10: #{tpu_custom_call.1} parent=5 // pred_check_branch
        %123 = sbr.rel (%p120) target = $region12
      $region11: #{tpu_custom_call.1} parent=5 // pred_region
        %s124 = ssub.s32 %s16, 1
        // Predicated region
        $region13: #{tpu_custom_call.1} parent=11 // pred_check
          %p125 = pneg %p63
        $region14: #{tpu_custom_call.1} parent=11 // pred_check_branch
          %127 = sbr.rel (%p125) target = $region16
        $region15: #{tpu_custom_call.1} parent=11 // pred_region
          %s129 = ssub.s32 256, 256
          %130 = vsyncadd [#allocation6], %s129
          %s131 = sshll.u32 [#allocation5], 4
          %s132 = int_to_ptr.vmem [resolvable:$true] %s131
          %137 = dma.hbm_to_vmem [thread:$0]  %s1, 256, %s132, [#allocation6], 64, 64, 4
        $region16: #{tpu_custom_call.1} parent=11 // pred_fallthru
          _
        // Predicated region
        $region17: #{tpu_custom_call.1} parent=11 // pred_check
          %p138 = pneg %p84
        $region18: #{tpu_custom_call.1} parent=11 // pred_check_branch
          %140 = sbr.rel (%p138) target = $region20
        $region19: #{tpu_custom_call.1} parent=11 // pred_region
          _
        $region20: #{tpu_custom_call.1} parent=11 // pred_fallthru
          _
      $region12: #{tpu_custom_call.1} parent=5 // pred_fallthru
        _
      %p141 = scmp.lt.s32.totalorder %s16, 2
      // Predicated region
      $region21: #{tpu_custom_call.1} parent=5 // pred_check
        %p142 = pneg %p141
      $region22: #{tpu_custom_call.1} parent=5 // pred_check_branch
        %144 = sbr.rel (%p142) target = $region24
      $region23: #{tpu_custom_call.1} parent=5 // pred_region
        // Predicated region
        $region25: #{tpu_custom_call.1} parent=23 // pred_check
          %p145 = pneg %p36
        $region26: #{tpu_custom_call.1} parent=23 // pred_check_branch
          %147 = sbr.rel (%p145) target = $region28
        $region27: #{tpu_custom_call.1} parent=23 // pred_region
          %s148 = sand.u32 %s26, 1
          %s149 = scalar_lea.sflag [#allocation3], %s148
          %s150 = sand.u32 %s26, 1
          %s151 = smul.addr %s150, 8
          %s152 = scalar_lea.vmem [#allocation2], %s151
          %s154 = ssub.s32 128, 128
          %155 = vsyncadd %s149, %s154
          %s156 = smul.addr %s16, 128
          %s157 = scalar_lea.hbm %s0, %s156
          %s159 = sshll.u32 %s152, 4
          %s160 = int_to_ptr.vmem [resolvable:$true] %s159
          %162 = dma.hbm_to_vmem [thread:$0]  %s157, 128, %s160, %s149
        $region28: #{tpu_custom_call.1} parent=23 // pred_fallthru
          _
      $region24: #{tpu_custom_call.1} parent=5 // pred_fallthru
        _
      %p163 = scmp.le.s32.totalorder 1, %s16
      %p164 = scmp.lt.s32.totalorder %s16, 3
      %p165 = pnand %p163, %p164
      %p166 = pneg %p165
      // Predicated region
      $region29: #{tpu_custom_call.1} parent=5 // pred_check
        _
      $region30: #{tpu_custom_call.1} parent=5 // pred_check_branch
        %168 = sbr.rel (%p165) target = $region32
      $region31: #{tpu_custom_call.1} parent=5 // pred_region
        %s169 = ssub.s32 %s16, 1
        %s170 = sand.u32 %s29, 1
        %s171 = scalar_lea.sflag [#allocation3], %s170
        %s172 = sand.u32 %s29, 1
        %s173 = smul.addr %s172, 8
        %s174 = scalar_lea.vmem [#allocation2], %s173
        // Predicated region
        $region33: #{tpu_custom_call.1} parent=31 // pred_check
          %p175 = pneg %p42
        $region34: #{tpu_custom_call.1} parent=31 // pred_check_branch
          %177 = sbr.rel (%p175) target = $region36
        $region35: #{tpu_custom_call.1} parent=31 // pred_region
          %178 = dma.done %s171, 128
        $region36: #{tpu_custom_call.1} parent=31 // pred_fallthru
          _
        // Predicated region
        $region37: #{tpu_custom_call.1} parent=31 // pred_check
          %p179 = pneg %p63
        $region38: #{tpu_custom_call.1} parent=31 // pred_check_branch
          %181 = sbr.rel (%p179) target = $region40
        $region39: #{tpu_custom_call.1} parent=31 // pred_region
          %182 = dma.done [#allocation6], 256
        $region40: #{tpu_custom_call.1} parent=31 // pred_fallthru
          _
        %s183 = sand.u32 %s29, 1
        %s184 = scalar_lea.sflag [#allocation3], %s183
        %s185 = sand.u32 %s29, 1
        %s186 = smul.addr %s185, 8
        %s187 = scalar_lea.vmem [#allocation2], %s186
        %p188 = pneg %p42
        %p189 = pneg %p39
        %p190 = pneg %p63
        %p191 = pneg %p60
        %p192 = pneg %p84
        %p193 = pneg %p81
        %p194 = pneg %p110
        %p195 = pneg %p107
        %s196 = sand.u32 %s97, 1
        %s197 = scalar_lea.sflag [#allocation4], %s196
        %s198 = sand.u32 %s97, 1
        %s199 = smul.addr %s198, 8
        %s200 = scalar_lea.vmem [#allocation7], %s199
        %v202 = vld [vmem:[%s174] sm:$0xff]
        %v203 = vpack.c.bf16 %v202, %v202
        %v204 = vld [vmem:[#allocation5] sm:$0xf]
        %v205 = vld [vmem:[#allocation5 + $0x4] sm:$0xf]
        %v206 = vld [vmem:[#allocation5 + $0x8] sm:$0xf]
        %v207 = vld [vmem:[#allocation5 + $0xc] sm:$0xf]
        %v208 = vld [vmem:[%s2] sm:$0x1]
        %v210 = vlaneseq
        %v211 = vshrl.u32 %v210, 7
        %v212 = vsub.s32 0, %v211
        %v213 = vrot.slane %v208, %v212
        %v219 = vunpack.c.l.b16 %v204
        %v220 = vunpack.c.l.b16 %v205
        %v221 = vunpack.c.l.b16 %v206
        %v222 = vunpack.c.l.b16 %v207
        %v223 = vpack.c.b16 %v220, %v219
        %v224 = vpack.c.b16 %v222, %v221
        %vm227 = vcmask 261120
        %v229 = vsel %vm227, %v203, 0
        %231 = vmatprep.subr.bf16.mxu0 0
        %232 = vmatpush1.bf16.msra.mxu0 %v223
        %233 = vmatprep.subr.bf16.mxu0 0
        %234 = vmatpush1.bf16.msra.mxu0 %v224
        %235 = vmatprep.subr.bf16.mxu0 0
        %236 = vmatpush1.bf16.msra.mxu0 0
        %237 = vmatprep.subr.bf16.mxu0 0
        %238 = vmatpush1.bf16.msra.mxu0 0
        %239 = vmatprep.subr.bf16.mxu0 0
        %240 = vmatpush1.bf16.msra.mxu0 0
        %241 = vmatprep.subr.bf16.mxu0 0
        %242 = vmatpush1.bf16.msra.mxu0 0
        %243 = vmatprep.subr.bf16.mxu0 0
        %244 = vmatpush1.bf16.msra.mxu0 0
        %245 = vmatprep.subr.bf16.mxu0 0
        %246 = vmatpush1.bf16.msra.mxu0 0
        %247 = vmatprep.subr.bf16.mxu0 0
        %248 = vmatpush1.bf16.msra.mxu0 0
        %249 = vmatprep.subr.bf16.mxu0 0
        %250 = vmatpush1.bf16.msra.mxu0 0
        %251 = vmatprep.subr.bf16.mxu0 0
        %252 = vmatpush1.bf16.msra.mxu0 0
        %253 = vmatprep.subr.bf16.mxu0 0
        %254 = vmatpush1.bf16.msra.mxu0 0
        %255 = vmatprep.subr.bf16.mxu0 0
        %256 = vmatpush1.bf16.msra.mxu0 0
        %257 = vmatprep.subr.bf16.mxu0 0
        %258 = vmatpush1.bf16.msra.mxu0 0
        %259 = vmatprep.subr.bf16.mxu0 0
        %260 = vmatpush1.bf16.msra.mxu0 0
        %261 = vmatprep.subr.bf16.mxu0 0
        %262 = vmatpush1.bf16.msra.mxu0 0
        %263 = vmatprep.mubr.bf16.mxu0 0
        %264 = vmatmul.mubr.bf16.gmra.mrb[0].mxu0 %v229
        %v265 = vpop.f32.mrb[0].mxu0
        %v266 = vadd.f32 %v213, %v265
        %v267 = vpop.f32.mrb[0].mxu0
        %v268 = vpop.f32.mrb[0].mxu0
        %v269 = vpop.f32.mrb[0].mxu0
        %270 = vdwg.mxu0
        %v271 = vpack.c.bf16 %v266, %v266
        %273 = vrot.lane.b32.xlu0 %v271, 96
        %v274 = vpop.permute.xlu0 %273
        %v276 = vsel %vm227, %v271, 0
        %v279 = vsel %vm227, %v274, 0
        %281 = vmatprep.subr.bf16.mxu0 0
        %282 = vmatpush1.bf16.xpose.msra.mxu0 %v279
        %283 = vmatprep.subr.bf16.mxu0 0
        %284 = vmatpush1.bf16.xpose.msra.mxu0 0
        %285 = vmatprep.subr.bf16.mxu0 0
        %286 = vmatpush1.bf16.xpose.msra.mxu0 0
        %287 = vmatprep.subr.bf16.mxu0 0
        %288 = vmatpush1.bf16.xpose.msra.mxu0 0
        %289 = vmatprep.subr.bf16.mxu0 0
        %290 = vmatpush1.bf16.xpose.msra.mxu0 0
        %291 = vmatprep.subr.bf16.mxu0 0
        %292 = vmatpush1.bf16.xpose.msra.mxu0 0
        %293 = vmatprep.subr.bf16.mxu0 0
        %294 = vmatpush1.bf16.xpose.msra.mxu0 0
        %295 = vmatprep.subr.bf16.mxu0 0
        %296 = vmatpush1.bf16.xpose.msra.mxu0 0
        %297 = vmatprep.subr.bf16.mxu0 0
        %298 = vmatpush1.bf16.xpose.msra.mxu0 0
        %299 = vmatprep.subr.bf16.mxu0 0
        %300 = vmatpush1.bf16.xpose.msra.mxu0 0
        %301 = vmatprep.subr.bf16.mxu0 0
        %302 = vmatpush1.bf16.xpose.msra.mxu0 0
        %303 = vmatprep.subr.bf16.mxu0 0
        %304 = vmatpush1.bf16.xpose.msra.mxu0 0
        %305 = vmatprep.subr.bf16.mxu0 0
        %306 = vmatpush1.bf16.xpose.msra.mxu0 0
        %307 = vmatprep.subr.bf16.mxu0 0
        %308 = vmatpush1.bf16.xpose.msra.mxu0 0
        %309 = vmatprep.subr.bf16.mxu0 0
        %310 = vmatpush1.bf16.xpose.msra.mxu0 0
        %311 = vmatprep.subr.bf16.mxu0 0
        %312 = vmatpush1.bf16.xpose.msra.mxu0 0
        %313 = vmatprep.mubr.bf16.mxu0 0
        %314 = vmatmul.mubr.bf16.gmra.mrb[0].mxu0 %v276
        %v315 = vpop.f32.mrb[0].mxu0
        %v316 = vadd.f32 0.0, %v315
        %v317 = vpop.f32.mrb[0].mxu0
        %v318 = vpop.f32.mrb[0].mxu0
        %v319 = vpop.f32.mrb[0].mxu0
        %320 = vdwg.mxu0
        %vm321 = vcmask 64512
        %v322 = vsel %vm321, %v316, -inf
        %323 = vmax.xlane.f32.xlu0 %v322
        %v324 = vpop.xlane.xlu0 %323
        %v325 = vsub.f32 %v316, %v324
        %v326 = vmul.f32 %v325, 1.442695
        %v327 = vpow.pop %v326
        %v328 = vsel %vm321, %v327, 0.0
        %329 = vadd.xlane.f32.xlu0 %v328
        %v330 = vpop.xlane.xlu0 %329
        %v331 = vpack.c.bf16 %v327, %v327
        %332 = vrot.lane.b32.xlu0 %v271, 64
        %v333 = vpop.permute.xlu0 %332
        %v335 = vsel %vm321, %v331, 0
        %vm337 = vcmask 1043456
        %v339 = vsel %vm337, %v333, 0
        %341 = vmatprep.subr.bf16.mxu0 0
        %342 = vmatpush1.bf16.msra.mxu0 %v339
        %343 = vmatprep.subr.bf16.mxu0 0
        %344 = vmatpush1.bf16.msra.mxu0 0
        %345 = vmatprep.subr.bf16.mxu0 0
        %346 = vmatpush1.bf16.msra.mxu0 0
        %347 = vmatprep.subr.bf16.mxu0 0
        %348 = vmatpush1.bf16.msra.mxu0 0
        %349 = vmatprep.subr.bf16.mxu0 0
        %350 = vmatpush1.bf16.msra.mxu0 0
        %351 = vmatprep.subr.bf16.mxu0 0
        %352 = vmatpush1.bf16.msra.mxu0 0
        %353 = vmatprep.subr.bf16.mxu0 0
        %354 = vmatpush1.bf16.msra.mxu0 0
        %355 = vmatprep.subr.bf16.mxu0 0
        %356 = vmatpush1.bf16.msra.mxu0 0
        %357 = vmatprep.subr.bf16.mxu0 0
        %358 = vmatpush1.bf16.msra.mxu0 0
        %359 = vmatprep.subr.bf16.mxu0 0
        %360 = vmatpush1.bf16.msra.mxu0 0
        %361 = vmatprep.subr.bf16.mxu0 0
        %362 = vmatpush1.bf16.msra.mxu0 0
        %363 = vmatprep.subr.bf16.mxu0 0
        %364 = vmatpush1.bf16.msra.mxu0 0
        %365 = vmatprep.subr.bf16.mxu0 0
        %366 = vmatpush1.bf16.msra.mxu0 0
        %367 = vmatprep.subr.bf16.mxu0 0
        %368 = vmatpush1.bf16.msra.mxu0 0
        %369 = vmatprep.subr.bf16.mxu0 0
        %370 = vmatpush1.bf16.msra.mxu0 0
        %371 = vmatprep.subr.bf16.mxu0 0
        %372 = vmatpush1.bf16.msra.mxu0 0
        %373 = vmatprep.mubr.bf16.mxu0 0
        %374 = vmatmul.mubr.bf16.gmra.mrb[0].mxu0 %v335
        %v375 = vpop.f32.mrb[0].mxu0
        %v376 = vadd.f32 0.0, %v375
        %v377 = vpop.f32.mrb[0].mxu0
        %v378 = vpop.f32.mrb[0].mxu0
        %v379 = vpop.f32.mrb[0].mxu0
        %380 = vdwg.mxu0
        %v381 = vrcp.pop %v330
        %v382 = vmul.f32 %v376, %v381
        %383 = vst.msk [vmem:[%s200] sm:$0xff] %vm227, %v382
        %s384 = sand.u32 %s97, 1
        %s385 = scalar_lea.sflag [#allocation4], %s384
        %s386 = sand.u32 %s97, 1
        %s387 = smul.addr %s386, 8
        %s388 = scalar_lea.vmem [#allocation7], %s387
        // Predicated region
        $region41: #{tpu_custom_call.1} parent=31 // pred_check
          %p389 = pneg %p107
        $region42: #{tpu_custom_call.1} parent=31 // pred_check_branch
          %391 = sbr.rel (%p389) target = $region44
        $region43: #{tpu_custom_call.1} parent=31 // pred_region
          %s393 = ssub.s32 128, 128
          %394 = vsyncadd %s385, %s393
          %s395 = smul.addr %s21, 128
          %s396 = scalar_lea.hbm %s3, %s395
          %s398 = sshll.u32 %s388, 4
          %s399 = int_to_ptr.vmem [resolvable:$true] %s398
          %401 = dma.vmem_to_hbm [thread:$0]  %s399, 128, %s396, %s385
        $region44: #{tpu_custom_call.1} parent=31 // pred_fallthru
          _
      $region32: #{tpu_custom_call.1} parent=5 // pred_fallthru
        _
      %p402 = scmp.le.s32.totalorder 2, %s16
      // Predicated region
      $region45: #{tpu_custom_call.1} parent=5 // pred_check
        %p403 = pneg %p402
      $region46: #{tpu_custom_call.1} parent=5 // pred_check_branch
        %405 = sbr.rel (%p403) target = $region48
      $region47: #{tpu_custom_call.1} parent=5 // pred_region
        %s406 = ssub.s32 %s16, 2
        // Predicated region
        $region49: #{tpu_custom_call.1} parent=47 // pred_check
          %p407 = pneg %p113
        $region50: #{tpu_custom_call.1} parent=47 // pred_check_branch
          %409 = sbr.rel (%p407) target = $region52
        $region51: #{tpu_custom_call.1} parent=47 // pred_region
          %s410 = sand.u32 %s98, 1
          %s411 = scalar_lea.sflag [#allocation4], %s410
          %s412 = sand.u32 %s98, 1
          %s413 = smul.addr %s412, 8
          %s414 = scalar_lea.vmem [#allocation7], %s413
          %415 = dma.done %s411, 128
        $region52: #{tpu_custom_call.1} parent=47 // pred_fallthru
          _
      $region48: #{tpu_custom_call.1} parent=5 // pred_fallthru
        _
    $region6: #{tpu_custom_call.1} parent=1 // loop_footer
      %s20 = sadd.s32 1, %s16
    $region7: #{tpu_custom_call.1} parent=1 // loop_footer_branch
      %15 = sbr.rel target = $region3
    $region8: #{tpu_custom_call.1} parent=1 // loop_exit
      _
    %416 = vsyncpa [#allocation3], 1
    %s417 = scalar_lea.sflag [#allocation3], 1
    %418 = vsyncpa %s417, 1
    %419 = vsyncpa [#allocation6], 1
    %420 = vsyncpa [#allocation4], 1
    %s421 = scalar_lea.sflag [#allocation4], 1
    %422 = vsyncpa %s421, 1

</llo_original>
